<compile_context>
chip_gen: v6e
topology: v6e:2x2x1
jax: 0.10.0
libtpu: 0.0.40
codegen_flags: <defaults>
</compile_context>

<pallas_src>
import jax
import jax.numpy as jnp
from jax.experimental import pallas as pl
from jax.experimental.pallas import tpu as pltpu


_LANE = 128
_SUBLANE = 8


def _round_up(x, m):
    return ((x + m - 1) // m) * m


def _vmem_budget_and_limit():
    """Generation-aware VMEM planning budget and Mosaic vmem limit."""
    cap = None
    try:
        cap = getattr(pltpu.get_tpu_info(), "vmem_capacity_bytes", None)
    except Exception:
        cap = None
    if cap is not None and cap >= 96 * 1024 * 1024:
        # v5e / v6e: 128 MiB physical VMEM.
        return 80 * 1024 * 1024, 100 * 1024 * 1024
    # v7x (64 MiB per TensorCore) or unknown: leave headroom for Mosaic
    # internal scratch -> never request the full physical VMEM.
    return 36 * 1024 * 1024, 52 * 1024 * 1024


def _maybe_buffered_spec(block_shape, index_map, buffer_count):
    """BlockSpec with an explicit pipeline buffer count when supported."""
    if buffer_count is not None and hasattr(pl, "Buffered"):
        try:
            return pl.BlockSpec(block_shape, index_map,
                                pipeline_mode=pl.Buffered(buffer_count))
        except TypeError:
            pass
    return pl.BlockSpec(block_shape, index_map)


def _adapter_kernel(x_ref, w1t_ref, w2t_ref, o_ref, h_ref):
    # x_ref:   (tm, c_in)          input dtype
    # w1t_ref: (c_in, hidden_pad)  compute dtype
    # w2t_ref: (hidden_pad, tn)    compute dtype
    # o_ref:   (tm, tn)            output dtype
    # h_ref:   (tm, hidden_pad)    f32 scratch, carried across the column axis
    @pl.when(pl.program_id(1) == 0)
    def _():
        # In-kernel cast of x (VPU, hidden under MXU/DMA) -> no extra HBM pass.
        x = x_ref[...].astype(w1t_ref.dtype)
        h = jnp.dot(x, w1t_ref[...], preferred_element_type=jnp.float32)
        h_ref[...] = jnp.maximum(h, 0.0)                      # ReLU #1 (f32)

    y = jnp.dot(h_ref[...].astype(w2t_ref.dtype), w2t_ref[...],
                preferred_element_type=jnp.float32)
    o_ref[...] = jnp.maximum(y, 0.0).astype(o_ref.dtype)      # ReLU #2


def prepare_adapter_weights(w1, w2, compute_dtype=None):
    """One-time weight prep (hoist out of the per-call path):
    optional cast, transpose to (in, out), and zero-pad hidden up to a
    128-lane multiple (exact: extra hidden units are ReLU(0) feeding zero
    rows of W2^T)."""
    hidden, c_in = w1.shape
    assert w2.shape == (c_in, hidden)
    if compute_dtype is not None:
        w1 = w1.astype(compute_dtype)
        w2 = w2.astype(compute_dtype)
    w1t = w1.T          # (c_in, hidden)
    w2t = w2.T          # (hidden, c_in)
    hidden_pad = _round_up(max(hidden, 1), _LANE)
    if hidden_pad != hidden:
        w1t = jnp.pad(w1t, ((0, 0), (0, hidden_pad - hidden)))
        w2t = jnp.pad(w2t, ((0, hidden_pad - hidden), (0, 0)))
    return w1t, w2t


def _select_tiles(M, c_in, hidden_pad, x_bytes, w_bytes, out_bytes,
                  tile_m, budget):
    # Resident W1^T: grid-invariant -> single pipeline buffer.
    w1_vmem = c_in * hidden_pad * w_bytes

    def weights_vmem(tn_, w2_bufs):
        return w1_vmem + w2_bufs * hidden_pad * tn_ * w_bytes

    # Column tile over W2^T / output: only when resident weights would eat
    # more than half of the budget (large c_in) and c_in is lane-aligned.
    tn, w2_buffers = c_in, 1
    if weights_vmem(c_in, 1) > budget // 2 and c_in % _LANE == 0:
        w2_buffers = 2
        tn = min(1024, c_in)
        while tn > _LANE and weights_vmem(tn, w2_buffers) > budget // 2:
            tn //= 2
        tn = max(tn, _LANE)
    wv = weights_vmem(tn, w2_buffers)

    # Row tile from the remaining budget.
    per_row = (2 * c_in * x_bytes                 # x tile (double-buffered)
               + 2 * tn * out_bytes               # out tile (double-buffered)
               + 4 * hidden_pad                   # h scratch (f32)
               + 4 * tn                           # y intermediate (f32)
               + w_bytes * (c_in + hidden_pad))   # in-kernel cast copies
    tm_cap = max((budget - wv) // per_row, _LANE)
    tm = min(int(tile_m), int(tm_cap))

    if M <= _LANE:
        tm = M                     # single full-extent row block (always legal)
    else:
        # Keep enough grid steps to software-pipeline HBM traffic and to feed
        # both v7x TensorCores on the "parallel" row axis.
        min_steps = 4 if M >= 4 * _LANE else 2
        tm = min(tm, _round_up(pl.cdiv(M, min_steps), _LANE))
        tm = max((tm // _LANE) * _LANE, _LANE)   # MXU/vreg-friendly multiple
    return tm, tn, w2_buffers


def adapter_forward_prepared(x, w1t, w2t, *, tile_m=1024, out_dtype=None):
    """Forward pass with pre-transposed / pre-padded weights (see
    prepare_adapter_weights)."""
    orig_shape = x.shape
    c_in = orig_shape[-1]
    hidden_pad = w1t.shape[1]
    assert w1t.shape == (c_in, hidden_pad)
    assert w2t.shape == (hidden_pad, c_in)
    out_dtype = x.dtype if out_dtype is None else jnp.dtype(out_dtype)

    x2d = x.reshape(-1, c_in)
    M = x2d.shape[0]

    x_bytes = x2d.dtype.itemsize
    w_bytes = w1t.dtype.itemsize
    out_bytes = jnp.dtype(out_dtype).itemsize

    budget, vmem_limit = _vmem_budget_and_limit()
    tm, tn, _ = _select_tiles(M, c_in, hidden_pad, x_bytes, w_bytes,
                              out_bytes, tile_m, budget)
    grid = (pl.cdiv(M, tm), pl.cdiv(c_in, tn))

    cost = pl.CostEstimate(
        flops=4 * M * c_in * hidden_pad,
        transcendentals=0,
        bytes_accessed=(M * c_in * (x_bytes + out_bytes)
                        + 2 * c_in * hidden_pad * w_bytes),
    )

    out2d = pl.pallas_call(
        _adapter_kernel,
        out_shape=jax.ShapeDtypeStruct((M, c_in), out_dtype),
        grid_spec=pltpu.PrefetchScalarGridSpec(
            num_scalar_prefetch=0,
            grid=grid,
            in_specs=[
                # x rows: block index independent of j -> fetched once per i.
                pl.BlockSpec((tm, c_in), lambda i, j: (i, 0)),
                # W1^T: grid-invariant -> single pipeline buffer.
                _maybe_buffered_spec((c_in, hidden_pad), lambda i, j: (0, 0), 1),
                # W2^T: grid-invariant only when there is one column tile.
                _maybe_buffered_spec((hidden_pad, tn), lambda i, j: (0, j),
                                     1 if grid[1] == 1 else None),
            ],
            out_specs=pl.BlockSpec((tm, tn), lambda i, j: (i, j)),
            scratch_shapes=[pltpu.VMEM((tm, hidden_pad), jnp.float32)],
        ),
        compiler_params=pltpu.CompilerParams(
            dimension_semantics=("parallel", "arbitrary"),
            vmem_limit_bytes=vmem_limit,
        ),
        cost_estimate=cost,
    )(x2d, w1t, w2t)

    return out2d.reshape(orig_shape)


def adapter_forward(x, w1, w2, *, tile_m=1024, compute_dtype=None,
                    out_dtype=None):
    """Pallas implementation of Adapter.forward.

    x  : (..., c_in)
    w1 : (c_in // reduction, c_in)   -- first Linear weight (out, in)
    w2 : (c_in, c_in // reduction)   -- second Linear weight (out, in)
    compute_dtype : optional narrow dtype (e.g. jnp.bfloat16) for the MXU
        inputs. Weights are cast once here; x is cast inside the kernel (no
        extra HBM pass). Accumulation and both ReLUs stay in f32. Opt-in
        numerics change; mainly pays on v5e where f32 can be MXU-bound.
    out_dtype : optional output dtype (e.g. bf16) to halve writeback bytes.
    """
    w1t, w2t = prepare_adapter_weights(w1, w2, compute_dtype)
    return adapter_forward_prepared(x, w1t, w2t, tile_m=tile_m,
                                    out_dtype=out_dtype)


def adapter_reference(x, w1, w2):
    """Pure-JAX reference matching the PyTorch module."""
    h = jnp.maximum(x @ w1.T, 0.0)
    y = jnp.maximum(h @ w2.T, 0.0)
    return y.astype(x.dtype)


if __name__ == "__main__":
    key = jax.random.PRNGKey(0)
    k_x, k_w1, k_w2, k_x2, k_w3, k_w4 = jax.random.split(key, 6)

    # --- Test 1: small shapes consistent with the module (tokens of dim c_in).
    batch, seq, c_in, reduction = 2, 8, 32, 4
    hidden = c_in // reduction

    x = jax.random.normal(k_x, (batch, seq, c_in), dtype=jnp.float32)
    # PyTorch Linear layout: (out, in).
    w1 = jax.random.normal(k_w1, (hidden, c_in), dtype=jnp.float32) * 0.1
    w2 = jax.random.normal(k_w2, (c_in, hidden), dtype=jnp.float32) * 0.1

    y = jax.block_until_ready(adapter_forward(x, w1, w2))
    y_ref = adapter_reference(x, w1, w2)
    assert y.shape == x.shape
    assert jnp.allclose(y, y_ref, atol=1e-5, rtol=1e-5), "mismatch vs reference"

    # --- Test 2: multi-step row grid + partial edge block (M not div by tm).
    M2, c_in2, red2 = 300, 256, 4
    hid2 = c_in2 // red2
    x2 = jax.random.normal(k_x2, (M2, c_in2), dtype=jnp.float32)
    w1b = jax.random.normal(k_w3, (hid2, c_in2), dtype=jnp.float32) * 0.05
    w2b = jax.random.normal(k_w4, (c_in2, hid2), dtype=jnp.float32) * 0.05

    y2 = jax.block_until_ready(adapter_forward(x2, w1b, w2b, tile_m=128))
    y2_ref = adapter_reference(x2, w1b, w2b)
    assert y2.shape == x2.shape
    assert jnp.allclose(y2, y2_ref, atol=1e-4, rtol=1e-4), "mismatch (partial block)"

    # --- Test 3: opt-in bf16 compute (in-kernel x cast), loose tolerance.
    y3 = jax.block_until_ready(
        adapter_forward(x2, w1b, w2b, tile_m=128, compute_dtype=jnp.bfloat16))
    assert y3.shape == x2.shape
    assert bool(jnp.all(jnp.isfinite(y3)))
    assert jnp.allclose(y3, y2_ref, atol=1e-1, rtol=1e-1), "mismatch (bf16 compute)"

    print("KERNEL_OK")
</pallas_src>

<mosaic_0001>
module attributes {stable_mosaic.version = 11 : i64} {
  func.func @_adapter_kernel(%arg0: i32, %arg1: i32, %arg2: memref<16x32xf32, #tpu.memory_space<vmem>>, %arg3: memref<32x128xf32, #tpu.memory_space<vmem>>, %arg4: memref<128x32xf32, #tpu.memory_space<vmem>>, %arg5: memref<16x32xf32, #tpu.memory_space<vmem>>, %arg6: memref<16x128xf32, #tpu.memory_space<vmem>>) attributes {dimension_semantics = [#tpu.dimension_semantics<parallel>, #tpu.dimension_semantics<arbitrary>], iteration_bounds = array<i64: 1, 1>, scalar_prefetch = 0 : i64, scratch_operands = 1 : i64, tpu.core_type = #tpu.core_type<tc>, window_params = [{transform_indices = @transform_0, window_bounds = array<i64: 16, 32>}, {pipeline_mode = #tpu.pipeline_mode<synchronous>, transform_indices = @transform_1, window_bounds = array<i64: 32, 128>}, {pipeline_mode = #tpu.pipeline_mode<synchronous>, transform_indices = @transform_2, window_bounds = array<i64: 128, 32>}, {transform_indices = @transform_3, window_bounds = array<i64: 16, 32>}]} {
    %c0_i32 = arith.constant 0 : i32
    %0 = arith.cmpi eq, %arg1, %c0_i32 : i32
    %1 = arith.extui %0 : i1 to i32
    %c0_i32_0 = arith.constant 0 : i32
    %2 = arith.cmpi ne, %1, %c0_i32_0 : i32
    scf.if %2 {
      %c0_7 = arith.constant 0 : index
      %c0_8 = arith.constant 0 : index
      %9 = vector.load %arg2[%c0_7, %c0_8] : memref<16x32xf32, #tpu.memory_space<vmem>>, vector<16x32xf32>
      %c0_9 = arith.constant 0 : index
      %c0_10 = arith.constant 0 : index
      %10 = vector.load %arg3[%c0_9, %c0_10] : memref<32x128xf32, #tpu.memory_space<vmem>>, vector<32x128xf32>
      %cst_11 = arith.constant dense<0.000000e+00> : vector<16x128xf32>
      %11 = tpu.matmul %9, %10, %cst_11 {dimension_numbers = #tpu.dot_dimension_numbers<[1], [0], [0], [1], [0, 0, 1, 1], [], []>} : vector<16x32xf32>, vector<32x128xf32>, vector<16x128xf32> -> vector<16x128xf32>
      %cst_12 = arith.constant 0.000000e+00 : f32
      %12 = vector.broadcast %cst_12 : f32 to vector<16x128xf32>
      %13 = arith.maximumf %11, %12 : vector<16x128xf32>
      %c0_13 = arith.constant 0 : index
      %c0_14 = arith.constant 0 : index
      %14 = vector.load %arg6[%c0_13, %c0_14] : memref<16x128xf32, #tpu.memory_space<vmem>>, vector<16x128xf32>
      tpu.vector_store %arg6[%c0_13, %c0_14], %13 {strides = array<i32>} : memref<16x128xf32, #tpu.memory_space<vmem>>, vector<16x128xf32>,
    } else {
    }
    %c0 = arith.constant 0 : index
    %c0_1 = arith.constant 0 : index
    %3 = vector.load %arg6[%c0, %c0_1] : memref<16x128xf32, #tpu.memory_space<vmem>>, vector<16x128xf32>
    %c0_2 = arith.constant 0 : index
    %c0_3 = arith.constant 0 : index
    %4 = vector.load %arg4[%c0_2, %c0_3] : memref<128x32xf32, #tpu.memory_space<vmem>>, vector<128x32xf32>
    %cst = arith.constant dense<0.000000e+00> : vector<16x32xf32>
    %5 = tpu.matmul %3, %4, %cst {dimension_numbers = #tpu.dot_dimension_numbers<[1], [0], [0], [1], [0, 0, 1, 1], [], []>} : vector<16x128xf32>, vector<128x32xf32>, vector<16x32xf32> -> vector<16x32xf32>
    %cst_4 = arith.constant 0.000000e+00 : f32
    %6 = vector.broadcast %cst_4 : f32 to vector<16x32xf32>
    %7 = arith.maximumf %5, %6 : vector<16x32xf32>
    %c0_5 = arith.constant 0 : index
    %c0_6 = arith.constant 0 : index
    %8 = vector.load %arg5[%c0_5, %c0_6] : memref<16x32xf32, #tpu.memory_space<vmem>>, vector<16x32xf32>
    tpu.vector_store %arg5[%c0_5, %c0_6], %7 {strides = array<i32>} : memref<16x32xf32, #tpu.memory_space<vmem>>, vector<16x32xf32>,
    return
  }
  func.func @transform_0(%arg0: i32, %arg1: i32) -> (i32, i32) {
    %c0_i32 = arith.constant 0 : i32
    %c0_i32_0 = arith.constant 0 : i32
    return %arg0, %c0_i32 : i32, i32
  }
  func.func @transform_1(%arg0: i32, %arg1: i32) -> (i32, i32) {
    %c0_i32 = arith.constant 0 : i32
    %c0_i32_0 = arith.constant 0 : i32
    %c0_i32_1 = arith.constant 0 : i32
    return %c0_i32, %c0_i32_0 : i32, i32
  }
  func.func @transform_2(%arg0: i32, %arg1: i32) -> (i32, i32) {
    %c0_i32 = arith.constant 0 : i32
    %c0_i32_0 = arith.constant 0 : i32
    return %c0_i32, %arg1 : i32, i32
  }
  func.func @transform_3(%arg0: i32, %arg1: i32) -> (i32, i32) {
    %c0_i32 = arith.constant 0 : i32
    return %arg0, %arg1 : i32, i32
  }
}

</mosaic_0001>

<llo_original>
// kernel: tpu_custom_call.1
$region0: #{tpu_custom_call.1}
  #allocation0 [shape = 'u32[]', space=smem, size = 0x4, offset = 0x4, fixed_abs, tag = 'smem constant byte address 0x4 - core index']
  #allocation1 [shape = 'u32[144,128]{1,0:T(1,128)}', space=vmem, size = 0x12000, scoped, tag = 'internal scratch']
  #allocation2 [shape = 'f32[16,128]{1,0:T(8,128)}', space=vmem, size = 0x2000, scoped, tag = 'scratch operand']
  %s0 = inlined_call_operand.vmem [shape: f32[16,32], index: 0, kind: input, shape index: {}]
  %s1 = inlined_call_operand.vmem [shape: f32[32,128], index: 1, kind: input, shape index: {}]
  %s2 = inlined_call_operand.vmem [shape: f32[128,32], index: 2, kind: input, shape index: {}]
  %s3 = inlined_call_operand.hbm [shape: f32[16,32], index: 3, kind: output, shape index: {}]
  %s4 = sld [smem:[#allocation0]]
  $region26: #{tpu_custom_call.1} parent=0
    _
  %s6 = ssub.s32 1, %s4
  %s7 = scalar_select 0, %s6, %s4
  $region1: #{tpu_custom_call.1} parent=0
    #allocation3 [shape = 'u8[8192]{0}', space=vmem, size = 0x2000, scoped, tag = 'output window, operand 0, single buffered']
    #allocation4 [shape = 's32[1]{0}', space=sflag, size = 0x4, scoped, tag = 'scoped memory for tpu_custom_call.1']
    %8 = vsyncpa [#allocation4], 0
    // Predicated region
    $region2: #{tpu_custom_call.1} parent=1 // pred_check
      _
    $region3: #{tpu_custom_call.1} parent=1 // pred_check_branch
      %10 = sbr.rel (0) target = $region5
    $region4: #{tpu_custom_call.1} parent=1 // pred_region
      _
    $region5: #{tpu_custom_call.1} parent=1 // pred_fallthru
      _
    // Predicated region
    $region6: #{tpu_custom_call.1} parent=1 // pred_check
      _
    $region7: #{tpu_custom_call.1} parent=1 // pred_check_branch
      %12 = sbr.rel (0) target = $region9
    $region8: #{tpu_custom_call.1} parent=1 // pred_region
      _
    $region9: #{tpu_custom_call.1} parent=1 // pred_fallthru
      _
    // Predicated region
    $region10: #{tpu_custom_call.1} parent=1 // pred_check
      _
    $region11: #{tpu_custom_call.1} parent=1 // pred_check_branch
      %14 = sbr.rel (0) target = $region13
    $region12: #{tpu_custom_call.1} parent=1 // pred_region
      _
    $region13: #{tpu_custom_call.1} parent=1 // pred_fallthru
      _
    %p15 = scmp.eq.s32.totalorder 0, 0
    // Predicated region
    $region14: #{tpu_custom_call.1} parent=1 // pred_check
      %p16 = pneg %p15
    $region15: #{tpu_custom_call.1} parent=1 // pred_check_branch
      %18 = sbr.rel (%p16) target = $region17
    $region16: #{tpu_custom_call.1} parent=1 // pred_region
      %v19 = vld [vmem:[%s0] sm:$0xff]
      %v20 = vld [vmem:[%s0 + $0x8] sm:$0xff]
      %v21 = vld [vmem:[%s1] sm:$0xff]
      %v22 = vld [vmem:[%s1 + $0x8] sm:$0xff]
      %v23 = vld [vmem:[%s1 + $0x10] sm:$0xff]
      %v24 = vld [vmem:[%s1 + $0x18] sm:$0xff]
      %vm25 = vcmask 261120
      %v27 = vsel %vm25, %v19, 0
      %v30 = vsel %vm25, %v20, 0
      %32 = vmatprep.subr.mxu0 0.0
      %33 = vmatpush1.msra.mxu0 0.0
      %34 = vmatprep.subr.mxu0 0.0
      %35 = vmatpush1.msra.mxu0 0.0
      %36 = vmatprep.subr.mxu0 0.0
      %37 = vmatpush1.msra.mxu0 0.0
      %38 = vmatprep.subr.mxu0 0.0
      %39 = vmatpush1.msra.mxu0 0.0
      %40 = vmatprep.subr.mxu0 0.0
      %41 = vmatpush1.msra.mxu0 0.0
      %42 = vmatprep.subr.mxu0 0.0
      %43 = vmatpush1.msra.mxu0 0.0
      %44 = vmatprep.subr.mxu0 0.0
      %45 = vmatpush1.msra.mxu0 0.0
      %46 = vmatprep.subr.mxu0 0.0
      %47 = vmatpush1.msra.mxu0 0.0
      %48 = vmatprep.subr.mxu0 0.0
      %49 = vmatpush1.msra.mxu0 0.0
      %50 = vmatprep.subr.mxu0 0.0
      %51 = vmatpush1.msra.mxu0 0.0
      %52 = vmatprep.subr.mxu0 0.0
      %53 = vmatpush1.msra.mxu0 0.0
      %54 = vmatprep.subr.mxu0 0.0
      %55 = vmatpush1.msra.mxu0 0.0
      %56 = vmatprep.subr.mxu0 0.0
      %57 = vmatpush1.msra.mxu0 %v24
      %58 = vmatprep.subr.mxu0 0.0
      %59 = vmatpush1.msra.mxu0 %v23
      %60 = vmatprep.subr.mxu0 0.0
      %61 = vmatpush1.msra.mxu0 %v22
      %62 = vmatprep.subr.mxu0 0.0
      %63 = vmatpush1.msra.mxu0 %v21
      %64 = vmatprep.subr.mxu0 0.0
      %65 = vmatpush2.msra.mxu0 0.0
      %66 = vmatprep.subr.mxu0 0.0
      %67 = vmatpush2.msra.mxu0 0.0
      %68 = vmatprep.subr.mxu0 0.0
      %69 = vmatpush2.msra.mxu0 0.0
      %70 = vmatprep.subr.mxu0 0.0
      %71 = vmatpush2.msra.mxu0 0.0
      %72 = vmatprep.subr.mxu0 0.0
      %73 = vmatpush2.msra.mxu0 0.0
      %74 = vmatprep.subr.mxu0 0.0
      %75 = vmatpush2.msra.mxu0 0.0
      %76 = vmatprep.subr.mxu0 0.0
      %77 = vmatpush2.msra.mxu0 0.0
      %78 = vmatprep.subr.mxu0 0.0
      %79 = vmatpush2.msra.mxu0 0.0
      %80 = vmatprep.subr.mxu0 0.0
      %81 = vmatpush2.msra.mxu0 0.0
      %82 = vmatprep.subr.mxu0 0.0
      %83 = vmatpush2.msra.mxu0 0.0
      %84 = vmatprep.subr.mxu0 0.0
      %85 = vmatpush2.msra.mxu0 0.0
      %86 = vmatprep.subr.mxu0 0.0
      %87 = vmatpush2.msra.mxu0 0.0
      %88 = vmatprep.subr.mxu0 0.0
      %89 = vmatpush2.msra.mxu0 0.0
      %90 = vmatprep.subr.mxu0 0.0
      %91 = vmatpush2.msra.mxu0 0.0
      %92 = vmatprep.subr.mxu0 0.0
      %93 = vmatpush2.msra.mxu0 0.0
      %94 = vmatprep.subr.mxu0 0.0
      %95 = vmatpush2.msra.mxu0 0.0
      %96 = vmatprep.mubr.f32.mxu0 0.0
      %97 = vmatmul.mubr.f32.gmra.mxu0 %v27
      %v98 = vpop.f32.mrf.mxu0
      %v99 = vadd.f32 0.0, %v98
      %v100 = vpop.f32.mrf.mxu0
      %101 = vmatprep.mubr.f32.mxu0 0.0
      %102 = vmatmul.mubr.f32.gmra.mxu0 %v30
      %v103 = vpop.f32.mrf.mxu0
      %v104 = vadd.f32 0.0, %v103
      %v105 = vpop.f32.mrf.mxu0
      %106 = vdwg.mxu0
      %v107 = vmax.f32 %v99, 0.0
      %v108 = vmax.f32 %v104, 0.0
      %109 = vst [vmem:[#allocation2] sm:$0xff] %v107
      %110 = vst [vmem:[#allocation2 + $0x8] sm:$0xff] %v108
    $region17: #{tpu_custom_call.1} parent=1 // pred_fallthru
      _
    %v111 = vld [vmem:[#allocation2] sm:$0xff]
    %v112 = vld [vmem:[#allocation2 + $0x8] sm:$0xff]
    %v113 = vld [vmem:[%s2] sm:$0xff]
    %v114 = vld [vmem:[%s2 + $0x8] sm:$0xff]
    %v115 = vld [vmem:[%s2 + $0x10] sm:$0xff]
    %v116 = vld [vmem:[%s2 + $0x18] sm:$0xff]
    %v117 = vld [vmem:[%s2 + $0x20] sm:$0xff]
    %v118 = vld [vmem:[%s2 + $0x28] sm:$0xff]
    %v119 = vld [vmem:[%s2 + $0x30] sm:$0xff]
    %v120 = vld [vmem:[%s2 + $0x38] sm:$0xff]
    %v121 = vld [vmem:[%s2 + $0x40] sm:$0xff]
    %v122 = vld [vmem:[%s2 + $0x48] sm:$0xff]
    %v123 = vld [vmem:[%s2 + $0x50] sm:$0xff]
    %v124 = vld [vmem:[%s2 + $0x58] sm:$0xff]
    %v125 = vld [vmem:[%s2 + $0x60] sm:$0xff]
    %v126 = vld [vmem:[%s2 + $0x68] sm:$0xff]
    %v127 = vld [vmem:[%s2 + $0x70] sm:$0xff]
    %v128 = vld [vmem:[%s2 + $0x78] sm:$0xff]
    %129 = vmatprep.subr.mxu0 0.0
    %130 = vmatpush1.msra.mxu0 %v128
    %131 = vmatprep.subr.mxu0 0.0
    %132 = vmatpush1.msra.mxu0 %v127
    %133 = vmatprep.subr.mxu0 0.0
    %134 = vmatpush1.msra.mxu0 %v126
    %135 = vmatprep.subr.mxu0 0.0
    %136 = vmatpush1.msra.mxu0 %v125
    %137 = vmatprep.subr.mxu0 0.0
    %138 = vmatpush1.msra.mxu0 %v124
    %139 = vmatprep.subr.mxu0 0.0
    %140 = vmatpush1.msra.mxu0 %v123
    %141 = vmatprep.subr.mxu0 0.0
    %142 = vmatpush1.msra.mxu0 %v122
    %143 = vmatprep.subr.mxu0 0.0
    %144 = vmatpush1.msra.mxu0 %v121
    %145 = vmatprep.subr.mxu0 0.0
    %146 = vmatpush1.msra.mxu0 %v120
    %147 = vmatprep.subr.mxu0 0.0
    %148 = vmatpush1.msra.mxu0 %v119
    %149 = vmatprep.subr.mxu0 0.0
    %150 = vmatpush1.msra.mxu0 %v118
    %151 = vmatprep.subr.mxu0 0.0
    %152 = vmatpush1.msra.mxu0 %v117
    %153 = vmatprep.subr.mxu0 0.0
    %154 = vmatpush1.msra.mxu0 %v116
    %155 = vmatprep.subr.mxu0 0.0
    %156 = vmatpush1.msra.mxu0 %v115
    %157 = vmatprep.subr.mxu0 0.0
    %158 = vmatpush1.msra.mxu0 %v114
    %159 = vmatprep.subr.mxu0 0.0
    %160 = vmatpush1.msra.mxu0 %v113
    %161 = vmatprep.subr.mxu0 0.0
    %162 = vmatpush2.msra.mxu0 0.0
    %163 = vmatprep.subr.mxu0 0.0
    %164 = vmatpush2.msra.mxu0 0.0
    %165 = vmatprep.subr.mxu0 0.0
    %166 = vmatpush2.msra.mxu0 0.0
    %167 = vmatprep.subr.mxu0 0.0
    %168 = vmatpush2.msra.mxu0 0.0
    %169 = vmatprep.subr.mxu0 0.0
    %170 = vmatpush2.msra.mxu0 0.0
    %171 = vmatprep.subr.mxu0 0.0
    %172 = vmatpush2.msra.mxu0 0.0
    %173 = vmatprep.subr.mxu0 0.0
    %174 = vmatpush2.msra.mxu0 0.0
    %175 = vmatprep.subr.mxu0 0.0
    %176 = vmatpush2.msra.mxu0 0.0
    %177 = vmatprep.subr.mxu0 0.0
    %178 = vmatpush2.msra.mxu0 0.0
    %179 = vmatprep.subr.mxu0 0.0
    %180 = vmatpush2.msra.mxu0 0.0
    %181 = vmatprep.subr.mxu0 0.0
    %182 = vmatpush2.msra.mxu0 0.0
    %183 = vmatprep.subr.mxu0 0.0
    %184 = vmatpush2.msra.mxu0 0.0
    %185 = vmatprep.subr.mxu0 0.0
    %186 = vmatpush2.msra.mxu0 0.0
    %187 = vmatprep.subr.mxu0 0.0
    %188 = vmatpush2.msra.mxu0 0.0
    %189 = vmatprep.subr.mxu0 0.0
    %190 = vmatpush2.msra.mxu0 0.0
    %191 = vmatprep.subr.mxu0 0.0
    %192 = vmatpush2.msra.mxu0 0.0
    %193 = vmatprep.mubr.f32.mxu0 0.0
    %194 = vmatmul.mubr.f32.gmra.mxu0 %v111
    %v195 = vpop.f32.mrf.mxu0
    %v196 = vadd.f32 0.0, %v195
    %v197 = vpop.f32.mrf.mxu0
    %198 = vmatprep.mubr.f32.mxu0 0.0
    %199 = vmatmul.mubr.f32.gmra.mxu0 %v112
    %v200 = vpop.f32.mrf.mxu0
    %v201 = vadd.f32 0.0, %v200
    %v202 = vpop.f32.mrf.mxu0
    %203 = vdwg.mxu0
    %v204 = vmax.f32 %v196, 0.0
    %v205 = vmax.f32 %v201, 0.0
    %vm206 = vcmask 261120
    %207 = vst.msk [vmem:[#allocation3] sm:$0xff] %vm206, %v204
    %208 = vst.msk [vmem:[#allocation3 + $0x8] sm:$0xff] %vm206, %v205
    // Predicated region
    $region18: #{tpu_custom_call.1} parent=1 // pred_check
      _
    $region19: #{tpu_custom_call.1} parent=1 // pred_check_branch
      %210 = sbr.rel (0) target = $region21
    $region20: #{tpu_custom_call.1} parent=1 // pred_region
      %s212 = ssub.s32 256, 256
      %213 = vsyncadd [#allocation4], %s212
      %s214 = sshll.u32 [#allocation3], 4
      %s215 = int_to_ptr.vmem [resolvable:$true] %s214
      %220 = dma.vmem_to_hbm [thread:$0]  %s215, 256, %s3, [#allocation4], 128, 128, 8
    $region21: #{tpu_custom_call.1} parent=1 // pred_fallthru
      _
    // Predicated region
    $region22: #{tpu_custom_call.1} parent=1 // pred_check
      _
    $region23: #{tpu_custom_call.1} parent=1 // pred_check_branch
      %222 = sbr.rel (0) target = $region25
    $region24: #{tpu_custom_call.1} parent=1 // pred_region
      %223 = dma.done [#allocation4], 256
    $region25: #{tpu_custom_call.1} parent=1 // pred_fallthru
      _
    %224 = vsyncpa [#allocation4], 1

</llo_original>
